<compile_context>
chip_gen: v6e
topology: v6e:2x2x1
jax: 0.10.0
libtpu: 0.0.40
codegen_flags: <defaults>
</compile_context>

<pallas_src>
import math

import jax
import jax.numpy as jnp
from jax.experimental import pallas as pl
from jax.experimental.pallas import tpu as pltpu


LANE = 128     # lane (last-dim) granularity
SUBLANE = 8    # sublane (second-to-last dim) granularity


def _round_up(v, m):
    return (v + m - 1) // m * m


def gcn_kernel(adj_ref, x_ref, w_ref, b_ref, out_ref):
    # Per-graph refs (batch dim squeezed by the BlockSpec):
    #   adj_ref: (Np, Np) f32, x_ref: (Np, Fi) f32, w_ref: (Fi, Fo), b_ref: (1, Fo)
    adj = adj_ref[...]
    x = x_ref[...]

    deg = jnp.sum(adj, axis=1, keepdims=True)          # (Np, 1) == torch.sum(adj, axis=1)
    inv_deg = pl.reciprocal(deg, approx=False)         # exact; approx=True -> EUP if tolerance allows

    # (D^-1 A D^-1) X == D^-1 (A (D^-1 X)); re-associated to avoid transposing
    # the (Np, 1) degree vector in-kernel.  Mathematically identical.
    x_scaled = x * inv_deg                              # D^-1 X
    h = jnp.dot(adj, x_scaled, preferred_element_type=jnp.float32) * inv_deg
    y = jnp.dot(h, w_ref[...], preferred_element_type=jnp.float32) + b_ref[...]
    out_ref[...] = jnp.maximum(y, 0.0).astype(out_ref.dtype)


def gcn_layer_batched(x, adj, weight, bias):
    """Batched GCN forward: x (B, N, F_in), adj (B, N, N) -> (B, N, F_out)."""
    B, N, F_in = x.shape
    F_out = weight.shape[1]

    # Lane-dense / sublane-aligned padding.  Padded adj rows get a 1 on the
    # diagonal (degree 1 -> no inf/NaN); padded x rows and feature cols are
    # zero; padded weight rows/cols and bias entries are zero, so the padded
    # region of the output is exactly relu(0) = 0 and is sliced off below.
    Np = _round_up(N, SUBLANE)
    Fi = _round_up(F_in, LANE)
    Fo = _round_up(F_out, LANE)

    adj_p = jnp.zeros((B, Np, Np), jnp.float32).at[:, :N, :N].set(adj)
    if Np > N:
        pad_idx = jnp.arange(N, Np)
        adj_p = adj_p.at[:, pad_idx, pad_idx].set(1.0)
    x_p = jnp.zeros((B, Np, Fi), jnp.float32).at[:, :N, :F_in].set(x)
    w_p = jnp.zeros((Fi, Fo), jnp.float32).at[:F_in, :F_out].set(weight)
    b_p = jnp.zeros((1, Fo), jnp.float32).at[0, :F_out].set(bias)

    out_p = pl.pallas_call(
        gcn_kernel,
        out_shape=jax.ShapeDtypeStruct((B, Np, Fo), jnp.float32),
        grid=(B,),
        in_specs=[
            pl.BlockSpec((None, Np, Np), lambda b: (b, 0, 0)),   # per-graph adj
            pl.BlockSpec((None, Np, Fi), lambda b: (b, 0, 0)),   # per-graph features
            pl.BlockSpec((Fi, Fo), lambda b: (0, 0)),            # shared weight
            pl.BlockSpec((1, Fo), lambda b: (0, 0)),             # shared bias
        ],
        out_specs=pl.BlockSpec((None, Np, Fo), lambda b: (b, 0, 0)),
        compiler_params=pltpu.CompilerParams(
            dimension_semantics=("parallel",)),
    )(adj_p, x_p, w_p, b_p)

    return out_p[:, :N, :F_out]


def gcn_layer(x, adj, weight, bias):
    """Single-graph forward matching GCNLayer.forward(x, adj_matrix)."""
    return gcn_layer_batched(x[None], adj[None], weight, bias)[0]


def xinitialization_std(mean, var_A, var_F, n, d):
    # Mirrors xinitialization()'s std computation from the PyTorch source.
    stds = [math.sqrt(2.0 * i / (d * n * var_A * i + d * mean ** 2)) for i in var_F]
    return float(sum(stds) / len(stds))


if __name__ == "__main__":
    # Module hyper-params.  Note: the original xinitialization produces a (d, d)
    # weight, so the module only type-checks when in_features == out_features.
    B = 4                       # number of graphs batched through one pallas_call
    N = 8                       # num_of_nodes
    F_IN = 32
    F_OUT = 32
    mean_A, var_A = 0.1, 1.0
    var_F = [1.0, 2.0]

    key = jax.random.PRNGKey(0)
    k_adj, k_x, k_w = jax.random.split(key, 3)

    # Deterministic inputs. adj gets +N*eye so degrees are strictly positive
    # (same behaviour the torch module relies on).
    adj = (jax.random.uniform(k_adj, (B, N, N), dtype=jnp.float32)
           + N * jnp.eye(N, dtype=jnp.float32))
    x = jax.random.normal(k_x, (B, N, F_IN), dtype=jnp.float32)

    # Deterministic parameter init: weight ~ N(0, std) per xinitialization, bias = 0.
    std = xinitialization_std(mean_A, var_A, var_F, N, F_OUT)
    weight = std * jax.random.normal(k_w, (F_IN, F_OUT), dtype=jnp.float32)
    bias = jnp.zeros((F_OUT,), dtype=jnp.float32)

    out = jax.block_until_ready(gcn_layer_batched(x, adj, weight, bias))

    # Pure-JAX reference mirroring the torch op order, per graph.
    def ref_one(xg, ag):
        deg = jnp.sum(ag, axis=1)
        d_inv = jnp.diag(1.0 / deg)                 # inverse of the diagonal degree matrix
        norm_adj = d_inv @ ag @ d_inv
        return jnp.maximum(norm_adj @ xg @ weight + bias, 0.0)

    ref = jax.vmap(ref_one)(x, adj)

    assert out.shape == (B, N, F_OUT) and out.dtype == jnp.float32
    assert jnp.allclose(out, ref, rtol=1e-4, atol=1e-5), "batched mismatch vs reference"

    # Single-graph path (exact GCNLayer.forward signature) shares the same kernel.
    out0 = jax.block_until_ready(gcn_layer(x[0], adj[0], weight, bias))
    assert jnp.allclose(out0, ref[0], rtol=1e-4, atol=1e-5), "single-graph mismatch vs reference"

    print("KERNEL_OK")
</pallas_src>

<mosaic_0001>
module attributes {stable_mosaic.version = 11 : i64} {
  func.func @gcn_kernel(%arg0: i32, %arg1: memref<1x8x8xf32, #tpu.memory_space<vmem>>, %arg2: memref<1x8x128xf32, #tpu.memory_space<vmem>>, %arg3: memref<128x128xf32, #tpu.memory_space<vmem>>, %arg4: memref<1x128xf32, #tpu.memory_space<vmem>>, %arg5: memref<1x8x128xf32, #tpu.memory_space<vmem>>) attributes {dimension_semantics = [#tpu.dimension_semantics<parallel>], iteration_bounds = array<i64: 4>, scalar_prefetch = 0 : i64, scratch_operands = 0 : i64, tpu.core_type = #tpu.core_type<tc>, window_params = [{transform_indices = @transform_0, window_bounds = array<i64: 1, 8, 8>}, {transform_indices = @transform_1, window_bounds = array<i64: 1, 8, 128>}, {pipeline_mode = #tpu.pipeline_mode<synchronous>, transform_indices = @transform_2, window_bounds = array<i64: 128, 128>}, {pipeline_mode = #tpu.pipeline_mode<synchronous>, transform_indices = @transform_3, window_bounds = array<i64: 1, 128>}, {transform_indices = @transform_4, window_bounds = array<i64: 1, 8, 128>}]} {
    %c0 = arith.constant 0 : index
    %c0_0 = arith.constant 0 : index
    %c0_1 = arith.constant 0 : index
    %0 = vector.load %arg1[%c0, %c0_0, %c0_1] : memref<1x8x8xf32, #tpu.memory_space<vmem>>, vector<1x8x8xf32>
    %1 = vector.shape_cast %0 : vector<1x8x8xf32> to vector<8x8xf32>
    %c0_2 = arith.constant 0 : index
    %c0_3 = arith.constant 0 : index
    %c0_4 = arith.constant 0 : index
    %2 = vector.load %arg2[%c0_2, %c0_3, %c0_4] : memref<1x8x128xf32, #tpu.memory_space<vmem>>, vector<1x8x128xf32>
    %3 = vector.shape_cast %2 : vector<1x8x128xf32> to vector<8x128xf32>
    %cst = arith.constant dense<0.000000e+00> : vector<8xf32>
    %4 = vector.multi_reduction <add>, %1, %cst [1] : vector<8x8xf32> to vector<8xf32>
    %5 = vector.shape_cast %4 : vector<8xf32> to vector<8x1xf32>
    %6 = tpu.reciprocal %5 : vector<8x1xf32> -> vector<8x1xf32>
    %7 = vector.broadcast %6 : vector<8x1xf32> to vector<8x128xf32>
    %8 = arith.mulf %3, %7 : vector<8x128xf32>
    %cst_5 = arith.constant dense<0.000000e+00> : vector<8x128xf32>
    %9 = tpu.matmul %1, %8, %cst_5 {dimension_numbers = #tpu.dot_dimension_numbers<[1], [0], [0], [1], [0, 0, 1, 1], [], []>} : vector<8x8xf32>, vector<8x128xf32>, vector<8x128xf32> -> vector<8x128xf32>
    %10 = vector.broadcast %6 : vector<8x1xf32> to vector<8x128xf32>
    %11 = arith.mulf %9, %10 : vector<8x128xf32>
    %c0_6 = arith.constant 0 : index
    %c0_7 = arith.constant 0 : index
    %12 = vector.load %arg3[%c0_6, %c0_7] : memref<128x128xf32, #tpu.memory_space<vmem>>, vector<128x128xf32>
    %cst_8 = arith.constant dense<0.000000e+00> : vector<8x128xf32>
    %13 = tpu.matmul %11, %12, %cst_8 {dimension_numbers = #tpu.dot_dimension_numbers<[1], [0], [0], [1], [0, 0, 1, 1], [], []>} : vector<8x128xf32>, vector<128x128xf32>, vector<8x128xf32> -> vector<8x128xf32>
    %c0_9 = arith.constant 0 : index
    %c0_10 = arith.constant 0 : index
    %14 = vector.load %arg4[%c0_9, %c0_10] : memref<1x128xf32, #tpu.memory_space<vmem>>, vector<1x128xf32>
    %15 = vector.broadcast %14 : vector<1x128xf32> to vector<8x128xf32>
    %16 = arith.addf %13, %15 : vector<8x128xf32>
    %cst_11 = arith.constant 0.000000e+00 : f32
    %17 = vector.broadcast %cst_11 : f32 to vector<8x128xf32>
    %18 = arith.maximumf %16, %17 : vector<8x128xf32>
    %c0_12 = arith.constant 0 : index
    %c0_13 = arith.constant 0 : index
    %c0_14 = arith.constant 0 : index
    %19 = vector.load %arg5[%c0_12, %c0_13, %c0_14] : memref<1x8x128xf32, #tpu.memory_space<vmem>>, vector<1x8x128xf32>
    %20 = vector.shape_cast %19 : vector<1x8x128xf32> to vector<8x128xf32>
    %21 = vector.shape_cast %18 : vector<8x128xf32> to vector<1x8x128xf32>
    tpu.vector_store %arg5[%c0_12, %c0_13, %c0_14], %21 {strides = array<i32>} : memref<1x8x128xf32, #tpu.memory_space<vmem>>, vector<1x8x128xf32>,
    return
  }
  func.func @transform_0(%arg0: i32) -> (i32, i32, i32) {
    %c0_i32 = arith.constant 0 : i32
    %c0_i32_0 = arith.constant 0 : i32
    %c0_i32_1 = arith.constant 0 : i32
    return %arg0, %c0_i32, %c0_i32_0 : i32, i32, i32
  }
  func.func @transform_1(%arg0: i32) -> (i32, i32, i32) {
    %c0_i32 = arith.constant 0 : i32
    %c0_i32_0 = arith.constant 0 : i32
    %c0_i32_1 = arith.constant 0 : i32
    return %arg0, %c0_i32, %c0_i32_0 : i32, i32, i32
  }
  func.func @transform_2(%arg0: i32) -> (i32, i32) {
    %c0_i32 = arith.constant 0 : i32
    %c0_i32_0 = arith.constant 0 : i32
    %c0_i32_1 = arith.constant 0 : i32
    return %c0_i32, %c0_i32_0 : i32, i32
  }
  func.func @transform_3(%arg0: i32) -> (i32, i32) {
    %c0_i32 = arith.constant 0 : i32
    %c0_i32_0 = arith.constant 0 : i32
    %c0_i32_1 = arith.constant 0 : i32
    return %c0_i32, %c0_i32_0 : i32, i32
  }
  func.func @transform_4(%arg0: i32) -> (i32, i32, i32) {
    %c0_i32 = arith.constant 0 : i32
    %c0_i32_0 = arith.constant 0 : i32
    %c0_i32_1 = arith.constant 0 : i32
    return %arg0, %c0_i32, %c0_i32_0 : i32, i32, i32
  }
}

</mosaic_0001>

<llo_original>
// kernel: tpu_custom_call.1
$region0: #{tpu_custom_call.1}
  #allocation0 [shape = 'u32[]', space=smem, size = 0x4, offset = 0x4, fixed_abs, tag = 'smem constant byte address 0x4 - core index']
  #allocation1 [shape = 'u32[144,128]{1,0:T(1,128)}', space=vmem, size = 0x12000, scoped, tag = 'internal scratch']
  %s0 = inlined_call_operand.hbm [shape: f32[4,8,8], index: 0, kind: input, shape index: {}]
  %s1 = inlined_call_operand.hbm [shape: f32[4,8,128], index: 1, kind: input, shape index: {}]
  %s2 = inlined_call_operand.hbm [shape: f32[128,128], index: 2, kind: input, shape index: {}]
  %s3 = inlined_call_operand.vmem [shape: f32[1,128], index: 3, kind: input, shape index: {}]
  %s4 = inlined_call_operand.hbm [shape: f32[4,8,128], index: 4, kind: output, shape index: {}]
  %s5 = sld [smem:[#allocation0]]
  $region61: #{tpu_custom_call.1} parent=0
    _
  %s7 = ssub.s32 1, %s5
  %s8 = scalar_select 0, %s7, %s5
  $region1: #{tpu_custom_call.1} parent=0
    #allocation2 [shape = 'u8[8192]{0}', space=vmem, size = 0x2000, scoped, tag = 'input window, operand 0']
    #allocation3 [shape = 's32[2]{0}', space=sflag, size = 0x8, scoped, tag = 'scoped memory for tpu_custom_call.1']
    #allocation4 [shape = 's32[2]{0}', space=sflag, size = 0x8, scoped, tag = 'scoped memory for tpu_custom_call.1']
    #allocation5 [shape = 'u8[8192]{0}', space=vmem, size = 0x2000, scoped, tag = 'input window, operand 1']
    #allocation6 [shape = 's32[2]{0}', space=sflag, size = 0x8, scoped, tag = 'scoped memory for tpu_custom_call.1']
    #allocation7 [shape = 'u8[65536]{0}', space=vmem, size = 0x10000, scoped, tag = 'input window, operand 2, single buffered']
    #allocation8 [shape = 'u8[8192]{0}', space=vmem, size = 0x2000, scoped, tag = 'output window, operand 0']
    %9 = vsyncpa [#allocation3], 0
    %s10 = scalar_lea.sflag [#allocation3], 1
    %11 = vsyncpa %s10, 0
    %12 = vsyncpa [#allocation6], 0
    %s13 = scalar_lea.sflag [#allocation6], 1
    %14 = vsyncpa %s13, 0
    %15 = vsyncpa [#allocation4], 0
    %s16 = scalar_lea.sflag [#allocation4], 1
    %17 = vsyncpa %s16, 0
    loop: start=0, step=1, limit=6
    $region2: #{tpu_custom_call.1} parent=1 // loop_pre_header
      _
    $region3: #{tpu_custom_call.1} parent=1 // loop_header
      %s19 = sphi 0, %s23
      %p20 = scmp.ge.s32.totalorder %s19, 6
      %s29 = sphi 0, %s31
      %s32 = sphi 0, %s29
      %s33 = sphi 0, %s32
      %s49 = sphi 0, %s33
      %s55 = sphi 0, %s57
      %s58 = sphi 0, %s55
      %s59 = sphi 0, %s58
      %s75 = sphi 0, %s59
      %s79 = sphi 0, %s79
      %s81 = sphi 0, %s79
      %s82 = sphi 0, %s81
      %s96 = sphi 0, %s82
      %s100 = sphi 0, %s100
      %s102 = sphi 0, %s100
      %s103 = sphi 0, %s102
      %s117 = sphi 0, %s103
      %s123 = sphi 0, %s125
      %s126 = sphi 0, %s123
      %s127 = sphi 0, %s126
      %s143 = sphi 0, %s127
    $region4: #{tpu_custom_call.1} parent=1 // loop_header_branch
      %22 = sbr.rel (%p20) target = $region8
    $region5: #{tpu_custom_call.1} parent=1 // loop_body
      %s24 = ssub.s32 %s19, 1
      %s25 = ssub.s32 %s19, 2
      %s26 = sadd.s32 %s19, 1
      %s27 = ssub.s32 %s19, %s26
      %p28 = scmp.eq.s32.totalorder %s27, 0
      %s30 = sadd.s32 %s29, 1
      %s31 = scalar_select %p28, %s29, %s30
      %p34 = pneg %p28
      %p35 = scmp.eq.s32.totalorder %s19, 3
      %p36 = por %p34, %p35
      %p37 = scmp.ne.s32.totalorder %s29, %s32
      %p38 = scmp.eq.s32.totalorder %s19, 0
      %p39 = por %p37, %p38
      %p40 = scmp.ne.s32.totalorder %s29, %s32
      %p41 = scmp.eq.s32.totalorder %s24, 3
      %p42 = por %p40, %p41
      %p43 = scmp.ne.s32.totalorder %s32, %s33
      %p44 = scmp.eq.s32.totalorder %s24, 0
      %p45 = por %p43, %p44
      %p46 = scmp.ne.s32.totalorder %s32, %s33
      %p47 = scmp.eq.s32.totalorder %s25, 3
      %p48 = por %p46, %p47
      %p50 = scmp.ne.s32.totalorder %s33, %s49
      %p51 = scmp.eq.s32.totalorder %s25, 0
      %p52 = por %p50, %p51
      %s53 = ssub.s32 %s19, %s26
      %p54 = scmp.eq.s32.totalorder %s53, 0
      %s56 = sadd.s32 %s55, 1
      %s57 = scalar_select %p54, %s55, %s56
      %p60 = pneg %p54
      %p61 = scmp.eq.s32.totalorder %s19, 3
      %p62 = por %p60, %p61
      %p63 = scmp.ne.s32.totalorder %s55, %s58
      %p64 = scmp.eq.s32.totalorder %s19, 0
      %p65 = por %p63, %p64
      %p66 = scmp.ne.s32.totalorder %s55, %s58
      %p67 = scmp.eq.s32.totalorder %s24, 3
      %p68 = por %p66, %p67
      %p69 = scmp.ne.s32.totalorder %s58, %s59
      %p70 = scmp.eq.s32.totalorder %s24, 0
      %p71 = por %p69, %p70
      %p72 = scmp.ne.s32.totalorder %s58, %s59
      %p73 = scmp.eq.s32.totalorder %s25, 3
      %p74 = por %p72, %p73
      %p76 = scmp.ne.s32.totalorder %s59, %s75
      %p77 = scmp.eq.s32.totalorder %s25, 0
      %p78 = por %p76, %p77
      %s80 = sadd.s32 %s79, 1
      %p83 = scmp.eq.s32.totalorder %s19, 3
      %p84 = scmp.ne.s32.totalorder %s79, %s81
      %p85 = scmp.eq.s32.totalorder %s19, 0
      %p86 = por %p84, %p85
      %p87 = scmp.ne.s32.totalorder %s79, %s81
      %p88 = scmp.eq.s32.totalorder %s24, 3
      %p89 = por %p87, %p88
      %p90 = scmp.ne.s32.totalorder %s81, %s82
      %p91 = scmp.eq.s32.totalorder %s24, 0
      %p92 = por %p90, %p91
      %p93 = scmp.ne.s32.totalorder %s81, %s82
      %p94 = scmp.eq.s32.totalorder %s25, 3
      %p95 = por %p93, %p94
      %p97 = scmp.ne.s32.totalorder %s82, %s96
      %p98 = scmp.eq.s32.totalorder %s25, 0
      %p99 = por %p97, %p98
      %s101 = sadd.s32 %s100, 1
      %p104 = scmp.eq.s32.totalorder %s19, 3
      %p105 = scmp.ne.s32.totalorder %s100, %s102
      %p106 = scmp.eq.s32.totalorder %s19, 0
      %p107 = por %p105, %p106
      %p108 = scmp.ne.s32.totalorder %s100, %s102
      %p109 = scmp.eq.s32.totalorder %s24, 3
      %p110 = por %p108, %p109
      %p111 = scmp.ne.s32.totalorder %s102, %s103
      %p112 = scmp.eq.s32.totalorder %s24, 0
      %p113 = por %p111, %p112
      %p114 = scmp.ne.s32.totalorder %s102, %s103
      %p115 = scmp.eq.s32.totalorder %s25, 3
      %p116 = por %p114, %p115
      %p118 = scmp.ne.s32.totalorder %s103, %s117
      %p119 = scmp.eq.s32.totalorder %s25, 0
      %p120 = por %p118, %p119
      %s121 = ssub.s32 %s19, %s26
      %p122 = scmp.eq.s32.totalorder %s121, 0
      %s124 = sadd.s32 %s123, 1
      %s125 = scalar_select %p122, %s123, %s124
      %p128 = pneg %p122
      %p129 = scmp.eq.s32.totalorder %s19, 3
      %p130 = por %p128, %p129
      %p131 = scmp.ne.s32.totalorder %s123, %s126
      %p132 = scmp.eq.s32.totalorder %s19, 0
      %p133 = por %p131, %p132
      %p134 = scmp.ne.s32.totalorder %s123, %s126
      %p135 = scmp.eq.s32.totalorder %s24, 3
      %p136 = por %p134, %p135
      %p137 = scmp.ne.s32.totalorder %s126, %s127
      %p138 = scmp.eq.s32.totalorder %s24, 0
      %p139 = por %p137, %p138
      %p140 = scmp.ne.s32.totalorder %s126, %s127
      %p141 = scmp.eq.s32.totalorder %s25, 3
      %p142 = por %p140, %p141
      %p144 = scmp.ne.s32.totalorder %s127, %s143
      %p145 = scmp.eq.s32.totalorder %s25, 0
      %p146 = por %p144, %p145
      %p147 = scmp.le.s32.totalorder 1, %s19
      %p148 = scmp.lt.s32.totalorder %s19, 5
      %p149 = pnand %p147, %p148
      %p150 = pneg %p149
      // Predicated region
      $region9: #{tpu_custom_call.1} parent=5 // pred_check
        _
      $region10: #{tpu_custom_call.1} parent=5 // pred_check_branch
        %152 = sbr.rel (%p149) target = $region12
      $region11: #{tpu_custom_call.1} parent=5 // pred_region
        %s153 = ssub.s32 %s19, 1
        // Predicated region
        $region13: #{tpu_custom_call.1} parent=11 // pred_check
          %p154 = pneg %p92
        $region14: #{tpu_custom_call.1} parent=11 // pred_check_branch
          %156 = sbr.rel (%p154) target = $region16
        $region15: #{tpu_custom_call.1} parent=11 // pred_region
          %s158 = ssub.s32 2048, 2048
          %159 = vsyncadd [#allocation6], %s158
          %s160 = sshll.u32 [#allocation7], 4
          %s161 = int_to_ptr.vmem [resolvable:$true] %s160
          %166 = dma.hbm_to_vmem [thread:$0]  %s2, 2048, %s161, [#allocation6], 128, 128, 8
        $region16: #{tpu_custom_call.1} parent=11 // pred_fallthru
          _
        // Predicated region
        $region17: #{tpu_custom_call.1} parent=11 // pred_check
          %p167 = pneg %p113
        $region18: #{tpu_custom_call.1} parent=11 // pred_check_branch
          %169 = sbr.rel (%p167) target = $region20
        $region19: #{tpu_custom_call.1} parent=11 // pred_region
          _
        $region20: #{tpu_custom_call.1} parent=11 // pred_fallthru
          _
      $region12: #{tpu_custom_call.1} parent=5 // pred_fallthru
        _
      %p170 = scmp.lt.s32.totalorder %s19, 4
      // Predicated region
      $region21: #{tpu_custom_call.1} parent=5 // pred_check
        %p171 = pneg %p170
      $region22: #{tpu_custom_call.1} parent=5 // pred_check_branch
        %173 = sbr.rel (%p171) target = $region24
      $region23: #{tpu_custom_call.1} parent=5 // pred_region
        // Predicated region
        $region25: #{tpu_custom_call.1} parent=23 // pred_check
          %p174 = pneg %p39
        $region26: #{tpu_custom_call.1} parent=23 // pred_check_branch
          %176 = sbr.rel (%p174) target = $region28
        $region27: #{tpu_custom_call.1} parent=23 // pred_region
          %s177 = sand.u32 %s29, 1
          %s178 = scalar_lea.sflag [#allocation3], %s177
          %s179 = sand.u32 %s29, 1
          %s180 = smul.addr %s179, 8
          %s181 = scalar_lea.vmem [#allocation2], %s180
          %s183 = ssub.s32 128, 128
          %184 = vsyncadd %s178, %s183
          %s185 = smul.addr %s19, 128
          %s186 = scalar_lea.hbm %s0, %s185
          %s188 = sshll.u32 %s181, 4
          %s189 = int_to_ptr.vmem [resolvable:$true] %s188
          %191 = dma.hbm_to_vmem [thread:$0]  %s186, 128, %s189, %s178
        $region28: #{tpu_custom_call.1} parent=23 // pred_fallthru
          _
        // Predicated region
        $region29: #{tpu_custom_call.1} parent=23 // pred_check
          %p192 = pneg %p65
        $region30: #{tpu_custom_call.1} parent=23 // pred_check_branch
          %194 = sbr.rel (%p192) target = $region32
        $region31: #{tpu_custom_call.1} parent=23 // pred_region
          %s195 = sand.u32 %s19, 1
          %s196 = scalar_lea.sflag [#allocation6], %s195
          %s197 = sand.u32 %s55, 1
          %s198 = smul.addr %s197, 8
          %s199 = scalar_lea.vmem [#allocation5], %s198
          %s201 = ssub.s32 128, 128
          %202 = vsyncadd %s196, %s201
          %s203 = smul.addr %s19, 128
          %s204 = scalar_lea.hbm %s1, %s203
          %s206 = sshll.u32 %s199, 4
          %s207 = int_to_ptr.vmem [resolvable:$true] %s206
          %209 = dma.hbm_to_vmem [thread:$0]  %s204, 128, %s207, %s196
        $region32: #{tpu_custom_call.1} parent=23 // pred_fallthru
          _
      $region24: #{tpu_custom_call.1} parent=5 // pred_fallthru
        _
      %p210 = scmp.le.s32.totalorder 1, %s19
      %p211 = scmp.lt.s32.totalorder %s19, 5
      %p212 = pnand %p210, %p211
      %p213 = pneg %p212
      // Predicated region
      $region33: #{tpu_custom_call.1} parent=5 // pred_check
        _
      $region34: #{tpu_custom_call.1} parent=5 // pred_check_branch
        %215 = sbr.rel (%p212) target = $region36
      $region35: #{tpu_custom_call.1} parent=5 // pred_region
        %s216 = ssub.s32 %s19, 1
        %s217 = sand.u32 %s32, 1
        %s218 = scalar_lea.sflag [#allocation3], %s217
        %s219 = sand.u32 %s32, 1
        %s220 = smul.addr %s219, 8
        %s221 = scalar_lea.vmem [#allocation2], %s220
        // Predicated region
        $region37: #{tpu_custom_call.1} parent=35 // pred_check
          %p222 = pneg %p45
        $region38: #{tpu_custom_call.1} parent=35 // pred_check_branch
          %224 = sbr.rel (%p222) target = $region40
        $region39: #{tpu_custom_call.1} parent=35 // pred_region
          %225 = dma.done %s218, 128
        $region40: #{tpu_custom_call.1} parent=35 // pred_fallthru
          _
        %s226 = sand.u32 %s24, 1
        %s227 = scalar_lea.sflag [#allocation6], %s226
        %s228 = sand.u32 %s58, 1
        %s229 = smul.addr %s228, 8
        %s230 = scalar_lea.vmem [#allocation5], %s229
        // Predicated region
        $region41: #{tpu_custom_call.1} parent=35 // pred_check
          %p231 = pneg %p71
        $region42: #{tpu_custom_call.1} parent=35 // pred_check_branch
          %233 = sbr.rel (%p231) target = $region44
        $region43: #{tpu_custom_call.1} parent=35 // pred_region
          %234 = dma.done %s227, 128
        $region44: #{tpu_custom_call.1} parent=35 // pred_fallthru
          _
        // Predicated region
        $region45: #{tpu_custom_call.1} parent=35 // pred_check
          %p235 = pneg %p92
        $region46: #{tpu_custom_call.1} parent=35 // pred_check_branch
          %237 = sbr.rel (%p235) target = $region48
        $region47: #{tpu_custom_call.1} parent=35 // pred_region
          %238 = dma.done [#allocation6], 2048
        $region48: #{tpu_custom_call.1} parent=35 // pred_fallthru
          _
        %s239 = sand.u32 %s32, 1
        %s240 = scalar_lea.sflag [#allocation3], %s239
        %s241 = sand.u32 %s32, 1
        %s242 = smul.addr %s241, 8
        %s243 = scalar_lea.vmem [#allocation2], %s242
        %p244 = pneg %p45
        %p245 = pneg %p42
        %s246 = sand.u32 %s24, 1
        %s247 = scalar_lea.sflag [#allocation6], %s246
        %s248 = sand.u32 %s58, 1
        %s249 = smul.addr %s248, 8
        %s250 = scalar_lea.vmem [#allocation5], %s249
        %p251 = pneg %p71
        %p252 = pneg %p68
        %p253 = pneg %p92
        %p254 = pneg %p89
        %p255 = pneg %p113
        %p256 = pneg %p110
        %p257 = pneg %p139
        %p258 = pneg %p136
        %s259 = sand.u32 %s126, 1
        %s260 = scalar_lea.sflag [#allocation4], %s259
        %s261 = sand.u32 %s126, 1
        %s262 = smul.addr %s261, 8
        %s263 = scalar_lea.vmem [#allocation8], %s262
        %v264 = vld [vmem:[%s221] sm:$0xff]
        %v265 = vld [vmem:[%s230] sm:$0xff]
        %vm266 = vcmask 64512
        %v267 = vsel %vm266, %v264, 0.0
        %268 = vadd.xlane.f32.xlu0 %v267
        %v269 = vpop.xlane.xlu0 %268
        %v270 = vrcp.pop %v269
        %v271 = vmul.f32 %v265, %v270
        %v273 = vsel %vm266, %v264, 0
        %275 = vmatprep.subr.mxu0 0.0
        %276 = vmatpush1.msra.mxu0 0.0
        %277 = vmatprep.subr.mxu0 0.0
        %278 = vmatpush1.msra.mxu0 0.0
        %279 = vmatprep.subr.mxu0 0.0
        %280 = vmatpush1.msra.mxu0 0.0
        %281 = vmatprep.subr.mxu0 0.0
        %282 = vmatpush1.msra.mxu0 0.0
        %283 = vmatprep.subr.mxu0 0.0
        %284 = vmatpush1.msra.mxu0 0.0
        %285 = vmatprep.subr.mxu0 0.0
        %286 = vmatpush1.msra.mxu0 0.0
        %287 = vmatprep.subr.mxu0 0.0
        %288 = vmatpush1.msra.mxu0 0.0
        %289 = vmatprep.subr.mxu0 0.0
        %290 = vmatpush1.msra.mxu0 0.0
        %291 = vmatprep.subr.mxu0 0.0
        %292 = vmatpush1.msra.mxu0 0.0
        %293 = vmatprep.subr.mxu0 0.0
        %294 = vmatpush1.msra.mxu0 0.0
        %295 = vmatprep.subr.mxu0 0.0
        %296 = vmatpush1.msra.mxu0 0.0
        %297 = vmatprep.subr.mxu0 0.0
        %298 = vmatpush1.msra.mxu0 0.0
        %299 = vmatprep.subr.mxu0 0.0
        %300 = vmatpush1.msra.mxu0 0.0
        %301 = vmatprep.subr.mxu0 0.0
        %302 = vmatpush1.msra.mxu0 0.0
        %303 = vmatprep.subr.mxu0 0.0
        %304 = vmatpush1.msra.mxu0 0.0
        %305 = vmatprep.subr.mxu0 0.0
        %306 = vmatpush1.msra.mxu0 %v271
        %307 = vmatprep.subr.mxu0 0.0
        %308 = vmatpush2.msra.mxu0 0.0
        %309 = vmatprep.subr.mxu0 0.0
        %310 = vmatpush2.msra.mxu0 0.0
        %311 = vmatprep.subr.mxu0 0.0
        %312 = vmatpush2.msra.mxu0 0.0
        %313 = vmatprep.subr.mxu0 0.0
        %314 = vmatpush2.msra.mxu0 0.0
        %315 = vmatprep.subr.mxu0 0.0
        %316 = vmatpush2.msra.mxu0 0.0
        %317 = vmatprep.subr.mxu0 0.0
        %318 = vmatpush2.msra.mxu0 0.0
        %319 = vmatprep.subr.mxu0 0.0
        %320 = vmatpush2.msra.mxu0 0.0
        %321 = vmatprep.subr.mxu0 0.0
        %322 = vmatpush2.msra.mxu0 0.0
        %323 = vmatprep.subr.mxu0 0.0
        %324 = vmatpush2.msra.mxu0 0.0
        %325 = vmatprep.subr.mxu0 0.0
        %326 = vmatpush2.msra.mxu0 0.0
        %327 = vmatprep.subr.mxu0 0.0
        %328 = vmatpush2.msra.mxu0 0.0
        %329 = vmatprep.subr.mxu0 0.0
        %330 = vmatpush2.msra.mxu0 0.0
        %331 = vmatprep.subr.mxu0 0.0
        %332 = vmatpush2.msra.mxu0 0.0
        %333 = vmatprep.subr.mxu0 0.0
        %334 = vmatpush2.msra.mxu0 0.0
        %335 = vmatprep.subr.mxu0 0.0
        %336 = vmatpush2.msra.mxu0 0.0
        %337 = vmatprep.subr.mxu0 0.0
        %338 = vmatpush2.msra.mxu0 0.0
        %339 = vmatprep.mubr.f32.mxu0 0.0
        %340 = vmatmul.mubr.f32.gmra.mxu0 %v273
        %v341 = vpop.f32.mrf.mxu0
        %v342 = vadd.f32 0.0, %v341
        %v343 = vpop.f32.mrf.mxu0
        %344 = vdwg.mxu0
        %v345 = vmul.f32 %v342, %v270
        %v346 = vld [vmem:[#allocation7] sm:$0xff]
        %v347 = vld [vmem:[#allocation7 + $0x8] sm:$0xff]
        %v348 = vld [vmem:[#allocation7 + $0x10] sm:$0xff]
        %v349 = vld [vmem:[#allocation7 + $0x18] sm:$0xff]
        %v350 = vld [vmem:[#allocation7 + $0x20] sm:$0xff]
        %v351 = vld [vmem:[#allocation7 + $0x28] sm:$0xff]
        %v352 = vld [vmem:[#allocation7 + $0x30] sm:$0xff]
        %v353 = vld [vmem:[#allocation7 + $0x38] sm:$0xff]
        %v354 = vld [vmem:[#allocation7 + $0x40] sm:$0xff]
        %v355 = vld [vmem:[#allocation7 + $0x48] sm:$0xff]
        %v356 = vld [vmem:[#allocation7 + $0x50] sm:$0xff]
        %v357 = vld [vmem:[#allocation7 + $0x58] sm:$0xff]
        %v358 = vld [vmem:[#allocation7 + $0x60] sm:$0xff]
        %v359 = vld [vmem:[#allocation7 + $0x68] sm:$0xff]
        %v360 = vld [vmem:[#allocation7 + $0x70] sm:$0xff]
        %v361 = vld [vmem:[#allocation7 + $0x78] sm:$0xff]
        %v362 = vld [vmem:[%s3] sm:$0x1]
        %v364 = vlaneseq
        %v365 = vshrl.u32 %v364, 7
        %v366 = vsub.s32 0, %v365
        %v367 = vrot.slane %v362, %v366
        %369 = vmatprep.subr.mxu0 0.0
        %370 = vmatpush1.msra.mxu0 %v361
        %371 = vmatprep.subr.mxu0 0.0
        %372 = vmatpush1.msra.mxu0 %v360
        %373 = vmatprep.subr.mxu0 0.0
        %374 = vmatpush1.msra.mxu0 %v359
        %375 = vmatprep.subr.mxu0 0.0
        %376 = vmatpush1.msra.mxu0 %v358
        %377 = vmatprep.subr.mxu0 0.0
        %378 = vmatpush1.msra.mxu0 %v357
        %379 = vmatprep.subr.mxu0 0.0
        %380 = vmatpush1.msra.mxu0 %v356
        %381 = vmatprep.subr.mxu0 0.0
        %382 = vmatpush1.msra.mxu0 %v355
        %383 = vmatprep.subr.mxu0 0.0
        %384 = vmatpush1.msra.mxu0 %v354
        %385 = vmatprep.subr.mxu0 0.0
        %386 = vmatpush1.msra.mxu0 %v353
        %387 = vmatprep.subr.mxu0 0.0
        %388 = vmatpush1.msra.mxu0 %v352
        %389 = vmatprep.subr.mxu0 0.0
        %390 = vmatpush1.msra.mxu0 %v351
        %391 = vmatprep.subr.mxu0 0.0
        %392 = vmatpush1.msra.mxu0 %v350
        %393 = vmatprep.subr.mxu0 0.0
        %394 = vmatpush1.msra.mxu0 %v349
        %395 = vmatprep.subr.mxu0 0.0
        %396 = vmatpush1.msra.mxu0 %v348
        %397 = vmatprep.subr.mxu0 0.0
        %398 = vmatpush1.msra.mxu0 %v347
        %399 = vmatprep.subr.mxu0 0.0
        %400 = vmatpush1.msra.mxu0 %v346
        %401 = vmatprep.subr.mxu0 0.0
        %402 = vmatpush2.msra.mxu0 0.0
        %403 = vmatprep.subr.mxu0 0.0
        %404 = vmatpush2.msra.mxu0 0.0
        %405 = vmatprep.subr.mxu0 0.0
        %406 = vmatpush2.msra.mxu0 0.0
        %407 = vmatprep.subr.mxu0 0.0
        %408 = vmatpush2.msra.mxu0 0.0
        %409 = vmatprep.subr.mxu0 0.0
        %410 = vmatpush2.msra.mxu0 0.0
        %411 = vmatprep.subr.mxu0 0.0
        %412 = vmatpush2.msra.mxu0 0.0
        %413 = vmatprep.subr.mxu0 0.0
        %414 = vmatpush2.msra.mxu0 0.0
        %415 = vmatprep.subr.mxu0 0.0
        %416 = vmatpush2.msra.mxu0 0.0
        %417 = vmatprep.subr.mxu0 0.0
        %418 = vmatpush2.msra.mxu0 0.0
        %419 = vmatprep.subr.mxu0 0.0
        %420 = vmatpush2.msra.mxu0 0.0
        %421 = vmatprep.subr.mxu0 0.0
        %422 = vmatpush2.msra.mxu0 0.0
        %423 = vmatprep.subr.mxu0 0.0
        %424 = vmatpush2.msra.mxu0 0.0
        %425 = vmatprep.subr.mxu0 0.0
        %426 = vmatpush2.msra.mxu0 0.0
        %427 = vmatprep.subr.mxu0 0.0
        %428 = vmatpush2.msra.mxu0 0.0
        %429 = vmatprep.subr.mxu0 0.0
        %430 = vmatpush2.msra.mxu0 0.0
        %431 = vmatprep.subr.mxu0 0.0
        %432 = vmatpush2.msra.mxu0 0.0
        %433 = vmatprep.mubr.f32.mxu0 0.0
        %434 = vmatmul.mubr.f32.gmra.mxu0 %v345
        %v435 = vpop.f32.mrf.mxu0
        %v436 = vadd.f32 %v367, %v435
        %v437 = vpop.f32.mrf.mxu0
        %438 = vdwg.mxu0
        %v439 = vmax.f32 %v436, 0.0
        %440 = vst [vmem:[%s263] sm:$0xff] %v439
        %s441 = sand.u32 %s126, 1
        %s442 = scalar_lea.sflag [#allocation4], %s441
        %s443 = sand.u32 %s126, 1
        %s444 = smul.addr %s443, 8
        %s445 = scalar_lea.vmem [#allocation8], %s444
        // Predicated region
        $region49: #{tpu_custom_call.1} parent=35 // pred_check
          %p446 = pneg %p136
        $region50: #{tpu_custom_call.1} parent=35 // pred_check_branch
          %448 = sbr.rel (%p446) target = $region52
        $region51: #{tpu_custom_call.1} parent=35 // pred_region
          %s450 = ssub.s32 128, 128
          %451 = vsyncadd %s442, %s450
          %s452 = smul.addr %s24, 128
          %s453 = scalar_lea.hbm %s4, %s452
          %s455 = sshll.u32 %s445, 4
          %s456 = int_to_ptr.vmem [resolvable:$true] %s455
          %458 = dma.vmem_to_hbm [thread:$0]  %s456, 128, %s453, %s442
        $region52: #{tpu_custom_call.1} parent=35 // pred_fallthru
          _
      $region36: #{tpu_custom_call.1} parent=5 // pred_fallthru
        _
      %p459 = scmp.le.s32.totalorder 2, %s19
      // Predicated region
      $region53: #{tpu_custom_call.1} parent=5 // pred_check
        %p460 = pneg %p459
      $region54: #{tpu_custom_call.1} parent=5 // pred_check_branch
        %462 = sbr.rel (%p460) target = $region56
      $region55: #{tpu_custom_call.1} parent=5 // pred_region
        %s463 = ssub.s32 %s19, 2
        // Predicated region
        $region57: #{tpu_custom_call.1} parent=55 // pred_check
          %p464 = pneg %p142
        $region58: #{tpu_custom_call.1} parent=55 // pred_check_branch
          %466 = sbr.rel (%p464) target = $region60
        $region59: #{tpu_custom_call.1} parent=55 // pred_region
          %s467 = sand.u32 %s127, 1
          %s468 = scalar_lea.sflag [#allocation4], %s467
          %s469 = sand.u32 %s127, 1
          %s470 = smul.addr %s469, 8
          %s471 = scalar_lea.vmem [#allocation8], %s470
          %472 = dma.done %s468, 128
        $region60: #{tpu_custom_call.1} parent=55 // pred_fallthru
          _
      $region56: #{tpu_custom_call.1} parent=5 // pred_fallthru
        _
    $region6: #{tpu_custom_call.1} parent=1 // loop_footer
      %s23 = sadd.s32 1, %s19
    $region7: #{tpu_custom_call.1} parent=1 // loop_footer_branch
      %18 = sbr.rel target = $region3
    $region8: #{tpu_custom_call.1} parent=1 // loop_exit
      _
    %473 = vsyncpa [#allocation3], 1
    %s474 = scalar_lea.sflag [#allocation3], 1
    %475 = vsyncpa %s474, 1
    %476 = vsyncpa [#allocation6], 1
    %s477 = scalar_lea.sflag [#allocation6], 1
    %478 = vsyncpa %s477, 1
    %479 = vsyncpa [#allocation4], 1
    %s480 = scalar_lea.sflag [#allocation4], 1
    %481 = vsyncpa %s480, 1

</llo_original>
